<compile_context>
chip_gen: v5e
topology: v5e:2x2
jax: 0.10.0
libtpu: 0.0.40
codegen_flags: <defaults>
</compile_context>

<pallas_src>
import numpy as np
import jax
import jax.numpy as jnp
from jax.experimental import pallas as pl
from jax.experimental.pallas import tpu as pltpu


# ---------------------------------------------------------------------------
# Pallas kernel: one timestep per (batch_tile, t) grid point.
#   fc1 GEMM + split GRU-gate GEMMs + gate math + fc2 reduce, h carried in the
#   VMEM-resident h_out block, v accumulated into a lane-dense (bt, T) block.
# ---------------------------------------------------------------------------
def ppo_critic_kernel(
    x_ref,                  # (bt, in)      mm_dtype   (t-th timestep slice)
    h0_ref,                 # (bt, H)       f32        (initial hidden state)
    w1_ref, b1_ref,         # (in, H) mm_dtype, (1, H) f32
    wgx_ref, wgh_ref,       # (H, 4H) mm_dtype each  [Wir|Wiz|Win|0], [Whr|Whz|0|Whn]
    bg_ref,                 # (1, 4H) f32  [bir+bhr | biz+bhz | bin | bhn]
    w2_ref, b2_ref,         # (1, H) f32 row, (1, 1) f32 scalar in SMEM
    v_ref,                  # out: (bt, T) f32, resident across t (lane-dense)
    hout_ref,               # out: (bt, H) f32, resident across t (recurrent carry)
):
    H = hout_ref.shape[-1]
    t = pl.program_id(1)
    mm_dtype = w1_ref.dtype

    # Init: zero the value accumulator, seed the recurrent carry from h0.
    @pl.when(t == 0)
    def _():
        v_ref[...] = jnp.zeros_like(v_ref)
        hout_ref[...] = h0_ref[...]

    h = hout_ref[...]                                          # (bt, H) f32 carry

    # fc1 + ReLU  (MXU in mm_dtype, f32 accumulation / elementwise).
    x = jnp.dot(x_ref[...], w1_ref[...], preferred_element_type=jnp.float32)
    x = jnp.maximum(x + b1_ref[...], 0.0)

    # Split GRU gate GEMMs (no lane concat; h-side push is independent of fc1):
    #   g = x @ [Wir|Wiz|Win|0] + h @ [Whr|Whz|0|Whn] + bg     -> (bt, 4H)
    gx = jnp.dot(x.astype(mm_dtype), wgx_ref[...], preferred_element_type=jnp.float32)
    gh = jnp.dot(h.astype(mm_dtype), wgh_ref[...], preferred_element_type=jnp.float32)
    g = gx + gh + bg_ref[...]

    # PyTorch GRUCell semantics:
    #   r = sigmoid(Wir x + bir + Whr h + bhr)
    #   z = sigmoid(Wiz x + biz + Whz h + bhz)
    #   n = tanh(Win x + bin + r * (Whn h + bhn))
    #   h' = (1 - z) * n + z * h
    rz = jax.nn.sigmoid(g[:, 0:2 * H])          # one EUP pass over both r and z
    r = rz[:, 0:H]
    z = rz[:, H:2 * H]
    n = jnp.tanh(g[:, 2 * H:3 * H] + r * g[:, 3 * H:4 * H])
    h_new = (1.0 - z) * n + z * h

    hout_ref[...] = h_new.astype(hout_ref.dtype)

    # fc2 value head: VPU multiply + lane reduce (no 1-lane MXU push).  Scatter
    # into the lane-dense resident (bt, T) value block via a one-hot time mask;
    # the dense HBM writeback happens once, after the t sweep.
    v = jnp.sum(h_new * w2_ref[...], axis=-1, keepdims=True) + b2_ref[0, 0]
    tmask = jax.lax.broadcasted_iota(jnp.int32, v_ref.shape, 1) == t
    v_ref[...] += jnp.where(tmask, v, 0.0)


# ---------------------------------------------------------------------------
# Batch-tile selection: VMEM-budget-aware, sublane-aligned, and leaving >= 2
# parallel grid steps (v7x dual TensorCore) when B is large enough.
# ---------------------------------------------------------------------------
def _pick_batch_tile(B, in_dim, H, T, x_bytes, budget_bytes=8 << 20):
    per_row = (2 * in_dim * x_bytes   # double-buffered x_t tile
               + 2 * H * 4            # h0 tile (double-buffered)
               + H * 4 + T * 4)       # resident h_out / v output blocks
    cap = max(8, budget_bytes // max(per_row, 1))
    cands = [t for t in range(8, min(B, cap) + 1, 8) if B % t == 0]
    if not cands:
        return B                       # block == full batch dim is always legal
    two_step = [t for t in cands if B // t >= 2]
    return max(two_step) if (two_step and B >= 16) else max(cands)


# ---------------------------------------------------------------------------
# Fused T-step rollout wrapper (one pallas_call for the whole rollout).
#   xs: (T, B, in_dim), hidden: (..., H)  ->  v: (T, B, 1), h_final: (B, H)
# ---------------------------------------------------------------------------
def ppo_critic_rollout(xs, hidden, params, use_bf16=True):
    H = params["b1"].shape[-1]
    T, B, in_dim = xs.shape

    mm_dtype = jnp.bfloat16 if use_bf16 else jnp.float32
    x = xs.astype(mm_dtype)                       # bf16 halves x DMA traffic
    h0 = hidden.reshape(-1, H).astype(jnp.float32)

    w1 = params["w1"].astype(mm_dtype)            # (in, H)
    wgx = params["wgx"].astype(mm_dtype)          # (H, 4H)
    wgh = params["wgh"].astype(mm_dtype)          # (H, 4H)
    b1, bg, w2, b2 = params["b1"], params["bg"], params["w2"], params["b2"]

    x_bytes = 2 if use_bf16 else 4
    bt = _pick_batch_tile(B, in_dim, H, T, x_bytes)
    grid = (B // bt, T)                           # batch outer (parallel), time inner

    def const_spec(a):
        nd = a.ndim
        return pl.BlockSpec(a.shape, lambda b, t, nd=nd: (0,) * nd)

    in_specs = [
        pl.BlockSpec((None, bt, in_dim), lambda b, t: (t, b, 0)),   # x_t slice
        pl.BlockSpec((bt, H), lambda b, t: (b, 0)),                 # h0
        const_spec(w1), const_spec(b1),
        const_spec(wgx), const_spec(wgh), const_spec(bg),
        const_spec(w2),
        pl.BlockSpec(memory_space=pltpu.MemorySpace.SMEM),          # b2 scalar
    ]
    out_specs = (
        pl.BlockSpec((bt, T), lambda b, t: (b, 0)),                 # v (lane-dense)
        pl.BlockSpec((bt, H), lambda b, t: (b, 0)),                 # h carry / h_out
    )

    v_bt, h_out = pl.pallas_call(
        ppo_critic_kernel,
        grid=grid,
        in_specs=in_specs,
        out_specs=out_specs,
        out_shape=(
            jax.ShapeDtypeStruct((B, T), jnp.float32),
            jax.ShapeDtypeStruct((B, H), jnp.float32),
        ),
        input_output_aliases={1: 1},   # h0 HBM buffer reused for h_out
        compiler_params=pltpu.CompilerParams(
            dimension_semantics=("parallel", "arbitrary")),
    )(x, h0, w1, b1, wgx, wgh, bg, w2, b2)

    v = jnp.transpose(v_bt)[:, :, None]           # (T, B, 1)
    return v, h_out


# ---------------------------------------------------------------------------
# Module-equivalent single-step forward (PPOCritic.forward semantics).
# Note: donate the hidden arg at the jit boundary (donate_argnums) in real
# training loops so the h_in/h_out alias is a true in-place HBM update.
# ---------------------------------------------------------------------------
def ppo_critic_forward(inputs, hidden, params, use_bf16=True):
    v, h = ppo_critic_rollout(inputs[None], hidden, params, use_bf16)
    return v[0], h


# ---------------------------------------------------------------------------
# Deterministic parameter init (mirrors nn.Linear / nn.GRUCell; fc1/fc2 get
# orthogonal init + zero bias as in layer_init).  Fused blocks built host-side.
# ---------------------------------------------------------------------------
def _orthogonal(key, out_dim, in_dim, gain=1.0):
    a = jax.random.normal(key, (max(out_dim, in_dim), min(out_dim, in_dim)))
    q, r = jnp.linalg.qr(a)
    q = q * jnp.sign(jnp.diag(r))
    if out_dim < in_dim:
        q = q.T
    return (gain * q[:out_dim, :in_dim]).astype(jnp.float32)


def make_params(key, critic_input_shape, hidden_dim):
    keys = jax.random.split(key, 6)
    H = hidden_dim

    # fc1: orthogonal weight (H, in), zero bias -> stored transposed (in, H).
    w1 = _orthogonal(keys[0], H, critic_input_shape, gain=1.0).T
    b1 = jnp.zeros((1, H), jnp.float32)

    # GRUCell: PyTorch default init U(-1/sqrt(H), 1/sqrt(H)).
    bound = 1.0 / np.sqrt(H)
    w_ih = jax.random.uniform(keys[1], (3 * H, H), jnp.float32, -bound, bound)
    w_hh = jax.random.uniform(keys[2], (3 * H, H), jnp.float32, -bound, bound)
    b_ih = jax.random.uniform(keys[3], (3 * H,), jnp.float32, -bound, bound)
    b_hh = jax.random.uniform(keys[4], (3 * H,), jnp.float32, -bound, bound)

    wir, wiz, win = w_ih[0:H].T, w_ih[H:2 * H].T, w_ih[2 * H:3 * H].T   # x @ W form
    whr, whz, whn = w_hh[0:H].T, w_hh[H:2 * H].T, w_hh[2 * H:3 * H].T
    bir, biz, bin_ = b_ih[0:H][None], b_ih[H:2 * H][None], b_ih[2 * H:3 * H][None]
    bhr, bhz, bhn = b_hh[0:H][None], b_hh[H:2 * H][None], b_hh[2 * H:3 * H][None]

    # Host-side split fused GRU weights (H, 4H) each and bias (1, 4H):
    #   Wgx columns = [Wir | Wiz | Win | 0 ],  Wgh columns = [Whr | Whz | 0 | Whn]
    #   bias        = [bir+bhr | biz+bhz | bin | bhn]
    zeros = jnp.zeros((H, H), jnp.float32)
    wgx = jnp.concatenate([wir, wiz, win, zeros], axis=1)
    wgh = jnp.concatenate([whr, whz, zeros, whn], axis=1)
    bg = jnp.concatenate([bir + bhr, biz + bhz, bin_, bhn], axis=1)

    # fc2: orthogonal weight (1, H) std=1, zero bias.  Kept as a (1, H) row for
    # the in-kernel VPU reduce; bias as a (1, 1) SMEM scalar.
    w2 = _orthogonal(keys[5], 1, H, gain=1.0)
    b2 = jnp.zeros((1, 1), jnp.float32)

    return dict(
        # fused params consumed by the kernel
        w1=w1, b1=b1, wgx=wgx, wgh=wgh, bg=bg, w2=w2, b2=b2,
        # unfused per-gate params used only by the pure-JAX reference
        wir=wir, wiz=wiz, win=win, bir=bir, biz=biz, bin=bin_,
        whr=whr, whz=whz, whn=whn, bhr=bhr, bhz=bhz, bhn=bhn,
    )


# ---------------------------------------------------------------------------
# Pure-JAX references (unfused, independent of the packed weight layout)
# ---------------------------------------------------------------------------
def reference_forward(inputs, hidden, p):
    H = p["b1"].shape[-1]
    x = jnp.maximum(inputs @ p["w1"] + p["b1"], 0.0)
    h = hidden.reshape(-1, H)
    r = jax.nn.sigmoid(x @ p["wir"] + p["bir"] + h @ p["whr"] + p["bhr"])
    z = jax.nn.sigmoid(x @ p["wiz"] + p["biz"] + h @ p["whz"] + p["bhz"])
    n = jnp.tanh(x @ p["win"] + p["bin"] + r * (h @ p["whn"] + p["bhn"]))
    h_new = (1.0 - z) * n + z * h
    v = h_new @ p["w2"].T + p["b2"]
    return v, h_new


def reference_rollout(xs, hidden, p):
    H = p["b1"].shape[-1]
    h = hidden.reshape(-1, H)
    vs = []
    for t in range(xs.shape[0]):
        v, h = reference_forward(xs[t], h, p)
        vs.append(v)
    return jnp.stack(vs), h


if __name__ == "__main__":
    B = 8                       # batch (e.g. n_agents * episodes)
    T = 8                       # rollout length for the fused-time-loop path
    critic_input_shape = 32
    rnn_hidden_dim = 32

    key = jax.random.PRNGKey(0)
    k_in, k_h, k_p, k_seq = jax.random.split(key, 4)

    inputs = jax.random.normal(k_in, (B, critic_input_shape), jnp.float32)
    hidden = jax.random.normal(k_h, (B, rnn_hidden_dim), jnp.float32)
    xs = jax.random.normal(k_seq, (T, B, critic_input_shape), jnp.float32)
    params = make_params(k_p, critic_input_shape, rnn_hidden_dim)

    # ---- single-step forward (module-equivalent semantics) ----
    v_ref_, h_ref_ = reference_forward(inputs, hidden, params)
    fwd = jax.jit(ppo_critic_forward, static_argnames=("use_bf16",))

    v32, h32 = fwd(inputs, hidden, params, use_bf16=False)
    jax.block_until_ready((v32, h32))
    assert v32.shape == (B, 1) and h32.shape == (B, rnn_hidden_dim)
    np.testing.assert_allclose(np.asarray(v32), np.asarray(v_ref_), rtol=1e-5, atol=1e-5)
    np.testing.assert_allclose(np.asarray(h32), np.asarray(h_ref_), rtol=1e-5, atol=1e-5)

    vbf, hbf = fwd(inputs, hidden, params, use_bf16=True)
    jax.block_until_ready((vbf, hbf))
    assert vbf.shape == (B, 1) and hbf.shape == (B, rnn_hidden_dim)
    np.testing.assert_allclose(np.asarray(vbf), np.asarray(v_ref_), rtol=5e-2, atol=5e-2)
    np.testing.assert_allclose(np.asarray(hbf), np.asarray(h_ref_), rtol=5e-2, atol=5e-2)

    # ---- fused T-step rollout (time loop hoisted into the kernel grid) ----
    v_roll_ref, h_roll_ref = reference_rollout(xs, hidden, params)
    roll = jax.jit(ppo_critic_rollout, static_argnames=("use_bf16",))

    vr32, hr32 = roll(xs, hidden, params, use_bf16=False)
    jax.block_until_ready((vr32, hr32))
    assert vr32.shape == (T, B, 1) and hr32.shape == (B, rnn_hidden_dim)
    np.testing.assert_allclose(np.asarray(vr32), np.asarray(v_roll_ref), rtol=1e-4, atol=1e-4)
    np.testing.assert_allclose(np.asarray(hr32), np.asarray(h_roll_ref), rtol=1e-4, atol=1e-4)

    # bf16 multi-step: validate compounded drift over T, not just one step.
    vrbf, hrbf = roll(xs, hidden, params, use_bf16=True)
    jax.block_until_ready((vrbf, hrbf))
    np.testing.assert_allclose(np.asarray(vrbf), np.asarray(v_roll_ref), rtol=1e-1, atol=1e-1)
    np.testing.assert_allclose(np.asarray(hrbf), np.asarray(h_roll_ref), rtol=1e-1, atol=1e-1)

    print("KERNEL_OK")
</pallas_src>

<mosaic_0001>
module attributes {stable_mosaic.version = 11 : i64} {
  func.func @ppo_critic_kernel(%arg0: i32, %arg1: i32, %arg2: memref<1x8x32xf32, #tpu.memory_space<vmem>>, %arg3: memref<8x32xf32, #tpu.memory_space<vmem>>, %arg4: memref<32x32xf32, #tpu.memory_space<vmem>>, %arg5: memref<1x32xf32, #tpu.memory_space<vmem>>, %arg6: memref<32x128xf32, #tpu.memory_space<vmem>>, %arg7: memref<32x128xf32, #tpu.memory_space<vmem>>, %arg8: memref<1x128xf32, #tpu.memory_space<vmem>>, %arg9: memref<1x32xf32, #tpu.memory_space<vmem>>, %arg10: memref<1x1xf32, #tpu.memory_space<smem>>, %arg11: memref<8x1xf32, #tpu.memory_space<vmem>>, %arg12: memref<8x32xf32, #tpu.memory_space<vmem>>) attributes {dimension_semantics = [#tpu.dimension_semantics<parallel>, #tpu.dimension_semantics<arbitrary>], iteration_bounds = array<i64: 1, 1>, scalar_prefetch = 0 : i64, scratch_operands = 0 : i64, tpu.core_type = #tpu.core_type<tc>, window_params = [{transform_indices = @transform_0, window_bounds = array<i64: 1, 8, 32>}, {transform_indices = @transform_1, window_bounds = array<i64: 8, 32>}, {pipeline_mode = #tpu.pipeline_mode<synchronous>, transform_indices = @transform_2, window_bounds = array<i64: 32, 32>}, {pipeline_mode = #tpu.pipeline_mode<synchronous>, transform_indices = @transform_3, window_bounds = array<i64: 1, 32>}, {pipeline_mode = #tpu.pipeline_mode<synchronous>, transform_indices = @transform_4, window_bounds = array<i64: 32, 128>}, {pipeline_mode = #tpu.pipeline_mode<synchronous>, transform_indices = @transform_5, window_bounds = array<i64: 32, 128>}, {pipeline_mode = #tpu.pipeline_mode<synchronous>, transform_indices = @transform_6, window_bounds = array<i64: 1, 128>}, {pipeline_mode = #tpu.pipeline_mode<synchronous>, transform_indices = @transform_7, window_bounds = array<i64: 1, 32>}, {transform_indices = @transform_8, window_bounds = array<i64: 1, 1>}, {transform_indices = @transform_9, window_bounds = array<i64: 8, 1>}, {transform_indices = @transform_10, window_bounds = array<i64: 8, 32>}]} {
    %c0_i32 = arith.constant 0 : i32
    %0 = arith.cmpi eq, %arg1, %c0_i32 : i32
    %1 = arith.extui %0 : i1 to i32
    %c0_i32_0 = arith.constant 0 : i32
    %2 = arith.cmpi ne, %1, %c0_i32_0 : i32
    scf.if %2 {
      %cst_32 = arith.constant 0.000000e+00 : f32
      %56 = vector.broadcast %cst_32 : f32 to vector<8x1xf32>
      %c0_33 = arith.constant 0 : index
      %c0_34 = arith.constant 0 : index
      %57 = vector.load %arg11[%c0_33, %c0_34] : memref<8x1xf32, #tpu.memory_space<vmem>>, vector<8x1xf32>
      tpu.vector_store %arg11[%c0_33, %c0_34], %56 {strides = array<i32>} : memref<8x1xf32, #tpu.memory_space<vmem>>, vector<8x1xf32>,
      %c0_35 = arith.constant 0 : index
      %c0_36 = arith.constant 0 : index
      %58 = vector.load %arg3[%c0_35, %c0_36] : memref<8x32xf32, #tpu.memory_space<vmem>>, vector<8x32xf32>
      %c0_37 = arith.constant 0 : index
      %c0_38 = arith.constant 0 : index
      %59 = vector.load %arg12[%c0_37, %c0_38] : memref<8x32xf32, #tpu.memory_space<vmem>>, vector<8x32xf32>
      tpu.vector_store %arg12[%c0_37, %c0_38], %58 {strides = array<i32>} : memref<8x32xf32, #tpu.memory_space<vmem>>, vector<8x32xf32>,
    } else {
    }
    %c0 = arith.constant 0 : index
    %c0_1 = arith.constant 0 : index
    %3 = vector.load %arg12[%c0, %c0_1] : memref<8x32xf32, #tpu.memory_space<vmem>>, vector<8x32xf32>
    %c0_2 = arith.constant 0 : index
    %c0_3 = arith.constant 0 : index
    %c0_4 = arith.constant 0 : index
    %4 = vector.load %arg2[%c0_2, %c0_3, %c0_4] : memref<1x8x32xf32, #tpu.memory_space<vmem>>, vector<1x8x32xf32>
    %5 = vector.shape_cast %4 : vector<1x8x32xf32> to vector<8x32xf32>
    %c0_5 = arith.constant 0 : index
    %c0_6 = arith.constant 0 : index
    %6 = vector.load %arg4[%c0_5, %c0_6] : memref<32x32xf32, #tpu.memory_space<vmem>>, vector<32x32xf32>
    %cst = arith.constant dense<0.000000e+00> : vector<8x32xf32>
    %7 = tpu.matmul %5, %6, %cst {dimension_numbers = #tpu.dot_dimension_numbers<[1], [0], [0], [1], [0, 0, 1, 1], [], []>} : vector<8x32xf32>, vector<32x32xf32>, vector<8x32xf32> -> vector<8x32xf32>
    %c0_7 = arith.constant 0 : index
    %c0_8 = arith.constant 0 : index
    %8 = vector.load %arg5[%c0_7, %c0_8] : memref<1x32xf32, #tpu.memory_space<vmem>>, vector<1x32xf32>
    %9 = vector.broadcast %8 : vector<1x32xf32> to vector<8x32xf32>
    %10 = arith.addf %7, %9 : vector<8x32xf32>
    %cst_9 = arith.constant 0.000000e+00 : f32
    %11 = vector.broadcast %cst_9 : f32 to vector<8x32xf32>
    %12 = arith.maximumf %10, %11 : vector<8x32xf32>
    %c0_10 = arith.constant 0 : index
    %c0_11 = arith.constant 0 : index
    %13 = vector.load %arg6[%c0_10, %c0_11] : memref<32x128xf32, #tpu.memory_space<vmem>>, vector<32x128xf32>
    %cst_12 = arith.constant dense<0.000000e+00> : vector<8x128xf32>
    %14 = tpu.matmul %12, %13, %cst_12 {dimension_numbers = #tpu.dot_dimension_numbers<[1], [0], [0], [1], [0, 0, 1, 1], [], []>} : vector<8x32xf32>, vector<32x128xf32>, vector<8x128xf32> -> vector<8x128xf32>
    %c0_13 = arith.constant 0 : index
    %c0_14 = arith.constant 0 : index
    %15 = vector.load %arg7[%c0_13, %c0_14] : memref<32x128xf32, #tpu.memory_space<vmem>>, vector<32x128xf32>
    %cst_15 = arith.constant dense<0.000000e+00> : vector<8x128xf32>
    %16 = tpu.matmul %3, %15, %cst_15 {dimension_numbers = #tpu.dot_dimension_numbers<[1], [0], [0], [1], [0, 0, 1, 1], [], []>} : vector<8x32xf32>, vector<32x128xf32>, vector<8x128xf32> -> vector<8x128xf32>
    %17 = arith.addf %14, %16 : vector<8x128xf32>
    %c0_16 = arith.constant 0 : index
    %c0_17 = arith.constant 0 : index
    %18 = vector.load %arg8[%c0_16, %c0_17] : memref<1x128xf32, #tpu.memory_space<vmem>>, vector<1x128xf32>
    %19 = vector.broadcast %18 : vector<1x128xf32> to vector<8x128xf32>
    %20 = arith.addf %17, %19 : vector<8x128xf32>
    %21 = vector.extract_strided_slice %20 {offsets = [0, 0], sizes = [8, 64], strides = [1, 1]} : vector<8x128xf32> to vector<8x64xf32>
    %22 = arith.negf %21 : vector<8x64xf32>
    %23 = math.exp %22 : vector<8x64xf32>
    %cst_18 = arith.constant 1.000000e+00 : f32
    %24 = vector.broadcast %cst_18 : f32 to vector<8x64xf32>
    %25 = arith.addf %24, %23 : vector<8x64xf32>
    %26 = arith.divf %24, %25 : vector<8x64xf32>
    %27 = vector.extract_strided_slice %26 {offsets = [0, 0], sizes = [8, 32], strides = [1, 1]} : vector<8x64xf32> to vector<8x32xf32>
    %28 = vector.extract_strided_slice %26 {offsets = [0, 32], sizes = [8, 32], strides = [1, 1]} : vector<8x64xf32> to vector<8x32xf32>
    %29 = vector.extract_strided_slice %20 {offsets = [0, 64], sizes = [8, 32], strides = [1, 1]} : vector<8x128xf32> to vector<8x32xf32>
    %30 = vector.extract_strided_slice %20 {offsets = [0, 96], sizes = [8, 32], strides = [1, 1]} : vector<8x128xf32> to vector<8x32xf32>
    %31 = arith.mulf %27, %30 : vector<8x32xf32>
    %32 = arith.addf %29, %31 : vector<8x32xf32>
    %33 = math.tanh %32 : vector<8x32xf32>
    %cst_19 = arith.constant 1.000000e+00 : f32
    %34 = vector.broadcast %cst_19 : f32 to vector<8x32xf32>
    %35 = arith.subf %34, %28 : vector<8x32xf32>
    %36 = arith.mulf %35, %33 : vector<8x32xf32>
    %37 = arith.mulf %28, %3 : vector<8x32xf32>
    %38 = arith.addf %36, %37 : vector<8x32xf32>
    %c0_20 = arith.constant 0 : index
    %c0_21 = arith.constant 0 : index
    %39 = vector.load %arg12[%c0_20, %c0_21] : memref<8x32xf32, #tpu.memory_space<vmem>>, vector<8x32xf32>
    tpu.vector_store %arg12[%c0_20, %c0_21], %38 {strides = array<i32>} : memref<8x32xf32, #tpu.memory_space<vmem>>, vector<8x32xf32>,
    %c0_22 = arith.constant 0 : index
    %c0_23 = arith.constant 0 : index
    %40 = vector.load %arg9[%c0_22, %c0_23] : memref<1x32xf32, #tpu.memory_space<vmem>>, vector<1x32xf32>
    %41 = vector.broadcast %40 : vector<1x32xf32> to vector<8x32xf32>
    %42 = arith.mulf %38, %41 : vector<8x32xf32>
    %cst_24 = arith.constant dense<0.000000e+00> : vector<8xf32>
    %43 = vector.multi_reduction <add>, %42, %cst_24 [1] : vector<8x32xf32> to vector<8xf32>
    %44 = vector.shape_cast %43 : vector<8xf32> to vector<8x1xf32>
    %c0_25 = arith.constant 0 : index
    %c0_26 = arith.constant 0 : index
    %45 = memref.load %arg10[%c0_25, %c0_26] : memref<1x1xf32, #tpu.memory_space<smem>>
    %46 = vector.broadcast %45 : f32 to vector<8x1xf32>
    %47 = arith.addf %44, %46 : vector<8x1xf32>
    %48 = tpu.iota {dimensions = array<i32: 1>} : vector<8x1xi32>
    %49 = vector.broadcast %arg1 : i32 to vector<8x1xi32>
    %50 = arith.cmpi eq, %48, %49 : vector<8x1xi32>
    %c0_27 = arith.constant 0 : index
    %c0_28 = arith.constant 0 : index
    %51 = vector.load %arg11[%c0_27, %c0_28] : memref<8x1xf32, #tpu.memory_space<vmem>>, vector<8x1xf32>
    %cst_29 = arith.constant 0.000000e+00 : f32
    %52 = vector.broadcast %cst_29 : f32 to vector<8x1xf32>
    %53 = arith.select %50, %47, %52 : vector<8x1xi1>, vector<8x1xf32>
    %54 = arith.addf %51, %53 : vector<8x1xf32>
    %c0_30 = arith.constant 0 : index
    %c0_31 = arith.constant 0 : index
    %55 = vector.load %arg11[%c0_30, %c0_31] : memref<8x1xf32, #tpu.memory_space<vmem>>, vector<8x1xf32>
    tpu.vector_store %arg11[%c0_30, %c0_31], %54 {strides = array<i32>} : memref<8x1xf32, #tpu.memory_space<vmem>>, vector<8x1xf32>,
    return
  }
  func.func @transform_0(%arg0: i32, %arg1: i32) -> (i32, i32, i32) {
    %c0_i32 = arith.constant 0 : i32
    %c0_i32_0 = arith.constant 0 : i32
    return %arg1, %arg0, %c0_i32 : i32, i32, i32
  }
  func.func @transform_1(%arg0: i32, %arg1: i32) -> (i32, i32) {
    %c0_i32 = arith.constant 0 : i32
    %c0_i32_0 = arith.constant 0 : i32
    return %arg0, %c0_i32 : i32, i32
  }
  func.func @transform_2(%arg0: i32, %arg1: i32) -> (i32, i32) {
    %c0_i32 = arith.constant 0 : i32
    %c0_i32_0 = arith.constant 0 : i32
    %c0_i32_1 = arith.constant 0 : i32
    return %c0_i32, %c0_i32_0 : i32, i32
  }
  func.func @transform_3(%arg0: i32, %arg1: i32) -> (i32, i32) {
    %c0_i32 = arith.constant 0 : i32
    %c0_i32_0 = arith.constant 0 : i32
    %c0_i32_1 = arith.constant 0 : i32
    return %c0_i32, %c0_i32_0 : i32, i32
  }
  func.func @transform_4(%arg0: i32, %arg1: i32) -> (i32, i32) {
    %c0_i32 = arith.constant 0 : i32
    %c0_i32_0 = arith.constant 0 : i32
    %c0_i32_1 = arith.constant 0 : i32
    return %c0_i32, %c0_i32_0 : i32, i32
  }
  func.func @transform_5(%arg0: i32, %arg1: i32) -> (i32, i32) {
    %c0_i32 = arith.constant 0 : i32
    %c0_i32_0 = arith.constant 0 : i32
    %c0_i32_1 = arith.constant 0 : i32
    return %c0_i32, %c0_i32_0 : i32, i32
  }
  func.func @transform_6(%arg0: i32, %arg1: i32) -> (i32, i32) {
    %c0_i32 = arith.constant 0 : i32
    %c0_i32_0 = arith.constant 0 : i32
    %c0_i32_1 = arith.constant 0 : i32
    return %c0_i32, %c0_i32_0 : i32, i32
  }
  func.func @transform_7(%arg0: i32, %arg1: i32) -> (i32, i32) {
    %c0_i32 = arith.constant 0 : i32
    %c0_i32_0 = arith.constant 0 : i32
    %c0_i32_1 = arith.constant 0 : i32
    return %c0_i32, %c0_i32_0 : i32, i32
  }
  func.func @transform_8(%arg0: i32, %arg1: i32) -> (i32, i32) {
    %c0_i32 = arith.constant 0 : i32
    %c0_i32_0 = arith.constant 0 : i32
    %c0_i32_1 = arith.constant 0 : i32
    return %c0_i32, %c0_i32_0 : i32, i32
  }
  func.func @transform_9(%arg0: i32, %arg1: i32) -> (i32, i32) {
    %c0_i32 = arith.constant 0 : i32
    %c0_i32_0 = arith.constant 0 : i32
    return %arg0, %c0_i32 : i32, i32
  }
  func.func @transform_10(%arg0: i32, %arg1: i32) -> (i32, i32) {
    %c0_i32 = arith.constant 0 : i32
    %c0_i32_0 = arith.constant 0 : i32
    return %arg0, %c0_i32 : i32, i32
  }
}

</mosaic_0001>

<llo_original>
// kernel: ppo_critic_forward.1
$region0: #{ppo_critic_forward.1}
  #allocation0 [shape = 'u32[]', space=smem, size = 0x4, offset = 0x4, fixed_abs, tag = 'smem constant byte address 0x4 - core index']
  #allocation1 [shape = 'u32[72,128]{1,0:T(1,128)}', space=vmem, size = 0x9000, scoped, tag = 'internal scratch']
  #allocation2 [shape = 'f32[1,1]{1,0:T(1,128)S(6)}', space=smem, size = 0x200, scoped, tag = 'scoped memory for ppo_critic_forward.1']
  %s0 = inlined_call_operand.vmem [shape: f32[1,8,32], index: 0, kind: input, shape index: {}]
  %s1 = inlined_call_operand.vmem [shape: f32[8,32], index: 1, kind: input, shape index: {}, may-alias: {1,10}]
  %s2 = inlined_call_operand.hbm [shape: f32[32,32], index: 2, kind: input, shape index: {}]
  %s3 = inlined_call_operand.vmem [shape: f32[1,32], index: 3, kind: input, shape index: {}]
  %s4 = inlined_call_operand.hbm [shape: f32[32,128], index: 4, kind: input, shape index: {}]
  %s5 = inlined_call_operand.hbm [shape: f32[32,128], index: 5, kind: input, shape index: {}]
  %s6 = inlined_call_operand.vmem [shape: f32[1,128], index: 6, kind: input, shape index: {}]
  %s7 = inlined_call_operand.vmem [shape: f32[1,32], index: 7, kind: input, shape index: {}]
  %s8 = inlined_call_operand.<no memory space> [shape: f32[1,1], index: 8, kind: input, shape index: {}]
  %s9 = inlined_call_operand.vmem [shape: f32[8,1], index: 9, kind: output, shape index: {0}]
  %s10 = inlined_call_operand.vmem [shape: f32[8,32], index: 10, kind: output, shape index: {1}, may-alias: {1,10}]
  %11 = xla_tuple %s9, %s10
  %s12 = sld [smem:[#allocation0]]
  $region70: #{ppo_critic_forward.1} parent=0
    _
  %s14 = ssub.s32 1, %s12
  %s15 = scalar_select 0, %s14, %s12
  %16 = sst [smem:[#allocation2]] %s8
  $region1: #{ppo_critic_forward.1} parent=0
    #allocation3 [shape = 'u8[16384]{0}', space=vmem, size = 0x4000, scoped, tag = 'input window, operand 2, single buffered']
    #allocation4 [shape = 's32[1]{0}', space=sflag, size = 0x4, scoped, tag = 'scoped memory for ppo_critic_forward.1']
    #allocation5 [shape = 'u8[16384]{0}', space=vmem, size = 0x4000, scoped, tag = 'input window, operand 4, single buffered']
    #allocation6 [shape = 's32[1]{0}', space=sflag, size = 0x4, scoped, tag = 'scoped memory for ppo_critic_forward.1']
    #allocation7 [shape = 'u8[16384]{0}', space=vmem, size = 0x4000, scoped, tag = 'input window, operand 5, single buffered']
    %17 = vsyncpa [#allocation4], 0
    %18 = vsyncpa [#allocation6], 0
    // Predicated region
    $region2: #{ppo_critic_forward.1} parent=1 // pred_check
      _
    $region3: #{ppo_critic_forward.1} parent=1 // pred_check_branch
      %20 = sbr.rel (0) target = $region5
    $region4: #{ppo_critic_forward.1} parent=1 // pred_region
      _
    $region5: #{ppo_critic_forward.1} parent=1 // pred_fallthru
      _
    // Predicated region
    $region6: #{ppo_critic_forward.1} parent=1 // pred_check
      _
    $region7: #{ppo_critic_forward.1} parent=1 // pred_check_branch
      %22 = sbr.rel (0) target = $region9
    $region8: #{ppo_critic_forward.1} parent=1 // pred_region
      _
    $region9: #{ppo_critic_forward.1} parent=1 // pred_fallthru
      _
    // Predicated region
    $region10: #{ppo_critic_forward.1} parent=1 // pred_check
      _
    $region11: #{ppo_critic_forward.1} parent=1 // pred_check_branch
      %24 = sbr.rel (0) target = $region13
    $region12: #{ppo_critic_forward.1} parent=1 // pred_region
      %26 = vsyncadd [#allocation4], 0
      %s27 = sshll.u32 %s2, 4
      %s28 = int_to_ptr.hbm [resolvable:$true] %s27
      %s29 = sshll.u32 [#allocation3], 4
      %s30 = int_to_ptr.vmem [resolvable:$true] %s29
      %35 = dma.hbm_to_vmem [thread:$0]  %s28, 512, %s30, [#allocation4], 128, 128, 8
    $region13: #{ppo_critic_forward.1} parent=1 // pred_fallthru
      _
    // Predicated region
    $region14: #{ppo_critic_forward.1} parent=1 // pred_check
      _
    $region15: #{ppo_critic_forward.1} parent=1 // pred_check_branch
      %37 = sbr.rel (0) target = $region17
    $region16: #{ppo_critic_forward.1} parent=1 // pred_region
      _
    $region17: #{ppo_critic_forward.1} parent=1 // pred_fallthru
      _
    // Predicated region
    $region18: #{ppo_critic_forward.1} parent=1 // pred_check
      _
    $region19: #{ppo_critic_forward.1} parent=1 // pred_check_branch
      %39 = sbr.rel (0) target = $region21
    $region20: #{ppo_critic_forward.1} parent=1 // pred_region
      %41 = vsyncadd [#allocation6], 0
      %s42 = sshll.u32 %s4, 4
      %s43 = int_to_ptr.hbm [resolvable:$true] %s42
      %s44 = sshll.u32 [#allocation5], 4
      %s45 = int_to_ptr.vmem [resolvable:$true] %s44
      %50 = dma.hbm_to_vmem [thread:$0]  %s43, 512, %s45, [#allocation6], 128, 128, 8
    $region21: #{ppo_critic_forward.1} parent=1 // pred_fallthru
      _
    // Predicated region
    $region22: #{ppo_critic_forward.1} parent=1 // pred_check
      _
    $region23: #{ppo_critic_forward.1} parent=1 // pred_check_branch
      %52 = sbr.rel (0) target = $region25
    $region24: #{ppo_critic_forward.1} parent=1 // pred_region
      %54 = vsyncadd [#allocation6], 0
      %s55 = sshll.u32 %s5, 4
      %s56 = int_to_ptr.hbm [resolvable:$true] %s55
      %s57 = sshll.u32 [#allocation7], 4
      %s58 = int_to_ptr.vmem [resolvable:$true] %s57
      %63 = dma.hbm_to_vmem [thread:$0]  %s56, 512, %s58, [#allocation6], 128, 128, 8
    $region25: #{ppo_critic_forward.1} parent=1 // pred_fallthru
      _
    // Predicated region
    $region26: #{ppo_critic_forward.1} parent=1 // pred_check
      _
    $region27: #{ppo_critic_forward.1} parent=1 // pred_check_branch
      %65 = sbr.rel (0) target = $region29
    $region28: #{ppo_critic_forward.1} parent=1 // pred_region
      _
    $region29: #{ppo_critic_forward.1} parent=1 // pred_fallthru
      _
    // Predicated region
    $region30: #{ppo_critic_forward.1} parent=1 // pred_check
      _
    $region31: #{ppo_critic_forward.1} parent=1 // pred_check_branch
      %67 = sbr.rel (0) target = $region33
    $region32: #{ppo_critic_forward.1} parent=1 // pred_region
      _
    $region33: #{ppo_critic_forward.1} parent=1 // pred_fallthru
      _
    // Predicated region
    $region34: #{ppo_critic_forward.1} parent=1 // pred_check
      _
    $region35: #{ppo_critic_forward.1} parent=1 // pred_check_branch
      %69 = sbr.rel (0) target = $region37
    $region36: #{ppo_critic_forward.1} parent=1 // pred_region
      _
    $region37: #{ppo_critic_forward.1} parent=1 // pred_fallthru
      _
    // Predicated region
    $region38: #{ppo_critic_forward.1} parent=1 // pred_check
      _
    $region39: #{ppo_critic_forward.1} parent=1 // pred_check_branch
      %71 = sbr.rel (0) target = $region41
    $region40: #{ppo_critic_forward.1} parent=1 // pred_region
      %73 = dma.done [#allocation4], 512
    $region41: #{ppo_critic_forward.1} parent=1 // pred_fallthru
      _
    // Predicated region
    $region42: #{ppo_critic_forward.1} parent=1 // pred_check
      _
    $region43: #{ppo_critic_forward.1} parent=1 // pred_check_branch
      %75 = sbr.rel (0) target = $region45
    $region44: #{ppo_critic_forward.1} parent=1 // pred_region
      %77 = dma.done [#allocation6], 512
    $region45: #{ppo_critic_forward.1} parent=1 // pred_fallthru
      _
    // Predicated region
    $region46: #{ppo_critic_forward.1} parent=1 // pred_check
      _
    $region47: #{ppo_critic_forward.1} parent=1 // pred_check_branch
      %79 = sbr.rel (0) target = $region49
    $region48: #{ppo_critic_forward.1} parent=1 // pred_region
      %81 = dma.done [#allocation6], 512
    $region49: #{ppo_critic_forward.1} parent=1 // pred_fallthru
      _
    %p82 = scmp.eq.s32.totalorder 0, 0
    // Predicated region
    $region50: #{ppo_critic_forward.1} parent=1 // pred_check
      %p83 = pneg %p82
    $region51: #{ppo_critic_forward.1} parent=1 // pred_check_branch
      %85 = sbr.rel (%p83) target = $region53
    $region52: #{ppo_critic_forward.1} parent=1 // pred_region
      %vm86 = vcmask 7168
      %87 = vst.msk [vmem:[%s9] sm:$0xff] %vm86, 0.0
      %v88 = vld [vmem:[%s1] sm:$0xff]
      %vm89 = vcmask 261120
      %90 = vst.msk [vmem:[%s10] sm:$0xff] %vm89, %v88
    $region53: #{ppo_critic_forward.1} parent=1 // pred_fallthru
      _
    %v91 = vld [vmem:[%s10] sm:$0xff]
    %v92 = vld [vmem:[%s0] sm:$0xff]
    %v93 = vld [vmem:[#allocation3] sm:$0xff]
    %v94 = vld [vmem:[#allocation3 + $0x8] sm:$0xff]
    %v95 = vld [vmem:[#allocation3 + $0x10] sm:$0xff]
    %v96 = vld [vmem:[#allocation3 + $0x18] sm:$0xff]
    %v97 = vld [vmem:[%s3] sm:$0x1]
    %v99 = vperm.slane %v97, 0
    %vm101 = vcmask 261120
    %v103 = vsel %vm101, %v92, 0
    %105 = vmatpush.msra.mxu0 0.0
    %106 = vmatpush.msra.mxu0 0.0
    %107 = vmatpush.msra.mxu0 0.0
    %108 = vmatpush.msra.mxu0 0.0
    %109 = vmatpush.msra.mxu0 0.0
    %110 = vmatpush.msra.mxu0 0.0
    %111 = vmatpush.msra.mxu0 0.0
    %112 = vmatpush.msra.mxu0 0.0
    %113 = vmatpush.msra.mxu0 0.0
    %114 = vmatpush.msra.mxu0 0.0
    %115 = vmatpush.msra.mxu0 0.0
    %116 = vmatpush.msra.mxu0 0.0
    %117 = vmatpush.msra.mxu0 %v96
    %118 = vmatpush.msra.mxu0 %v95
    %119 = vmatpush.msra.mxu0 %v94
    %120 = vmatpush.msra.mxu0 %v93
    %121 = vmatmul.f32.gmra.mxu0 %v103
    %v122 = vpop.f32.mrf.mxu0
    %v123 = vadd.f32 %v99, %v122
    %124 = vdwg.mxu0
    %v125 = vmax.f32 %v123, 0.0
    %v126 = vld [vmem:[#allocation5] sm:$0xff]
    %v127 = vld [vmem:[#allocation5 + $0x8] sm:$0xff]
    %v128 = vld [vmem:[#allocation5 + $0x10] sm:$0xff]
    %v129 = vld [vmem:[#allocation5 + $0x18] sm:$0xff]
    %v130 = vld [vmem:[#allocation7] sm:$0xff]
    %v131 = vld [vmem:[#allocation7 + $0x8] sm:$0xff]
    %v132 = vld [vmem:[#allocation7 + $0x10] sm:$0xff]
    %v133 = vld [vmem:[#allocation7 + $0x18] sm:$0xff]
    %v135 = vsel %vm101, %v91, 0
    %137 = vmatpush.msra.mxu0 0.0
    %138 = vmatpush.msra.mxu0 0.0
    %139 = vmatpush.msra.mxu0 0.0
    %140 = vmatpush.msra.mxu0 0.0
    %141 = vmatpush.msra.mxu0 0.0
    %142 = vmatpush.msra.mxu0 0.0
    %143 = vmatpush.msra.mxu0 0.0
    %144 = vmatpush.msra.mxu0 0.0
    %145 = vmatpush.msra.mxu0 0.0
    %146 = vmatpush.msra.mxu0 0.0
    %147 = vmatpush.msra.mxu0 0.0
    %148 = vmatpush.msra.mxu0 0.0
    %149 = vmatpush.msra.mxu0 %v133
    %150 = vmatpush.msra.mxu0 %v132
    %151 = vmatpush.msra.mxu0 %v131
    %152 = vmatpush.msra.mxu0 %v130
    %153 = vmatmul.f32.gmra.mxu0 %v135
    %v154 = vpop.f32.mrf.mxu0
    %v155 = vadd.f32 0.0, %v154
    %156 = vdwg.mxu0
    %v158 = vsel %vm101, %v125, 0
    %160 = vmatpush.msra.mxu0 0.0
    %161 = vmatpush.msra.mxu0 0.0
    %162 = vmatpush.msra.mxu0 0.0
    %163 = vmatpush.msra.mxu0 0.0
    %164 = vmatpush.msra.mxu0 0.0
    %165 = vmatpush.msra.mxu0 0.0
    %166 = vmatpush.msra.mxu0 0.0
    %167 = vmatpush.msra.mxu0 0.0
    %168 = vmatpush.msra.mxu0 0.0
    %169 = vmatpush.msra.mxu0 0.0
    %170 = vmatpush.msra.mxu0 0.0
    %171 = vmatpush.msra.mxu0 0.0
    %172 = vmatpush.msra.mxu0 %v129
    %173 = vmatpush.msra.mxu0 %v128
    %174 = vmatpush.msra.mxu0 %v127
    %175 = vmatpush.msra.mxu0 %v126
    %176 = vmatmul.f32.gmra.mxu0 %v158
    %v177 = vpop.f32.mrf.mxu0
    %v178 = vadd.f32 %v155, %v177
    %179 = vdwg.mxu0
    %v180 = vld [vmem:[%s6] sm:$0x1]
    %v182 = vperm.slane %v180, 0
    %v184 = vadd.f32 %v178, %v182
    %v185 = vxor.u32 %v184, 2147483648
    %v186 = vmul.f32 %v185, 1.442695
    %v187 = vpow.pop %v186
    %v188 = vadd.f32 %v187, 1.0
    %v189 = vrcp.pop %v188
    %v190 = vmul.f32 %v188, %v189
    %v191 = vsub.f32 1.0, %v190
    %v192 = vmul.f32 %v189, %v191
    %v193 = vadd.f32 %v189, %v192
    %vm194 = vweird.f32 %v188
    %vm195 = vweird.f32 %v189
    %vm196 = vmor %vm194, %vm195
    %v197 = vsel %vm196, %v189, %v193
    %v198 = vand.u32 2147483647, %v188
    %vm199 = vcmp.eq.f32.partialorder %v198, 8.507059e+37
    %v200 = vand.u32 %v188, 2147483648
    %v201 = vor.u32 1.1754944e-38, %v200
    %v202 = vsel %vm199, %v201, %v197
    %v203 = vmul.f32 1.0, %v202
    %205 = vrot.lane.b32.xlu0 %v184, 32
    %v206 = vpop.permute.xlu0 %205
    %v208 = vmul.f32 %v203, %v206
    %210 = vrot.lane.b32.xlu0 %v208, 64
    %v211 = vpop.permute.xlu0 %210
    %v213 = vadd.f32 %v184, %v211
    %v214 = vtanh.pop %v213
    %v215 = vsub.f32 1.0, %v203
    %217 = vrot.lane.b32.xlu0 %v214, 96
    %v218 = vpop.permute.xlu0 %217
    %v220 = vmul.f32 %v215, %v218
    %221 = vrot.lane.b32.xlu0 %v91, 32
    %v222 = vpop.permute.xlu0 %221
    %v224 = vmul.f32 %v203, %v222
    %v225 = vadd.f32 %v220, %v224
    %227 = vrot.lane.b32.xlu0 %v225, 96
    %v228 = vpop.permute.xlu0 %227
    %230 = vst.msk [vmem:[%s10] sm:$0xff] %vm101, %v228
    %v231 = vld [vmem:[%s7] sm:$0x1]
    %v233 = vperm.slane %v231, 0
    %234 = vrot.lane.b32.xlu0 %v233, 32
    %v235 = vpop.permute.xlu0 %234
    %v237 = vmul.f32 %v225, %v235
    %239 = vrot.lane.b32.xlu0 %v237, 96
    %v240 = vpop.permute.xlu0 %239
    %v242 = vsel %vm101, %v240, 0.0
    %243 = vadd.xlane.f32.xlu0 %v242
    %v244 = vpop.xlane.xlu0 %243
    %s245 = sld [smem:[#allocation2]]
    %v246 = vstv %s245
    %v247 = vadd.f32 %v244, %v246
    %v248 = vlaneseq
    %v249 = vand.u32 %v248, 127
    %v250 = vstv 0
    %vm251 = vcmp.eq.s32.totalorder %v249, %v250
    %v252 = vld [vmem:[%s9] sm:$0xff]
    %v253 = vsel %vm251, %v247, 0.0
    %v254 = vadd.f32 %v252, %v253
    %vm255 = vcmask 7168
    %256 = vst.msk [vmem:[%s9] sm:$0xff] %vm255, %v254
    // Predicated region
    $region54: #{ppo_critic_forward.1} parent=1 // pred_check
      _
    $region55: #{ppo_critic_forward.1} parent=1 // pred_check_branch
      %258 = sbr.rel (0) target = $region57
    $region56: #{ppo_critic_forward.1} parent=1 // pred_region
      _
    $region57: #{ppo_critic_forward.1} parent=1 // pred_fallthru
      _
    // Predicated region
    $region58: #{ppo_critic_forward.1} parent=1 // pred_check
      _
    $region59: #{ppo_critic_forward.1} parent=1 // pred_check_branch
      %260 = sbr.rel (0) target = $region61
    $region60: #{ppo_critic_forward.1} parent=1 // pred_region
      _
    $region61: #{ppo_critic_forward.1} parent=1 // pred_fallthru
      _
    // Predicated region
    $region62: #{ppo_critic_forward.1} parent=1 // pred_check
      _
    $region63: #{ppo_critic_forward.1} parent=1 // pred_check_branch
      %262 = sbr.rel (0) target = $region65
    $region64: #{ppo_critic_forward.1} parent=1 // pred_region
      _
    $region65: #{ppo_critic_forward.1} parent=1 // pred_fallthru
      _
    // Predicated region
    $region66: #{ppo_critic_forward.1} parent=1 // pred_check
      _
    $region67: #{ppo_critic_forward.1} parent=1 // pred_check_branch
      %264 = sbr.rel (0) target = $region69
    $region68: #{ppo_critic_forward.1} parent=1 // pred_region
      _
    $region69: #{ppo_critic_forward.1} parent=1 // pred_fallthru
      _
    %265 = vsyncpa [#allocation4], 1
    %266 = vsyncpa [#allocation6], 1

</llo_original>
